<compile_context>
chip_gen: v5e
topology: v5e:2x2
jax: 0.10.0
libtpu: 0.0.40
codegen_flags: <defaults>
</compile_context>

<pallas_src>
from collections import OrderedDict

import jax
import jax.numpy as jnp
from jax.experimental import pallas as pl
from jax.experimental.pallas import tpu as pltpu


_MIB = 1024 * 1024
_ALIGN = 16  # bf16 sublane packing -> interior halo store at a 16-aligned column


# ---------------------------------------------------------------------------
# Hardware-derived budgets
# ---------------------------------------------------------------------------

def _device_kind():
    try:
        return jax.devices()[0].device_kind.lower()
    except Exception:
        return ""


def _vmem_limit_bytes():
    cap = None
    try:
        cap = int(pltpu.get_tpu_info().vmem_capacity_bytes)
        if cap <= 0:
            cap = None
    except Exception:
        cap = None
    if cap is None:
        cap = 64 * _MIB if "v7" in _device_kind() else 128 * _MIB
    # leave headroom for compiler-internal scratch; ~48 MiB on v7x, ~96 on v5e/v6e
    return max(32 * _MIB, min(int(cap * 0.75), 110 * _MIB))


def _mxu_k_depth():
    kind = _device_kind()
    if any(t in kind for t in ("v2", "v3", "v4", "v5")):
        return 128
    return 256  # v6e / v7x


def _pick_tile_h(H, est_fn, need_even, budget):
    """Largest row-tile (divisor of H) that fits the VMEM budget, preferring
    enough grid steps for pipelining / dual-TC work at small batch."""
    cands = [d for d in range(H, 0, -1)
             if H % d == 0 and ((not need_even) or d % 2 == 0)]
    if not cands:
        cands = [H]  # odd H with fused pool -> single tile, crop last row
    fitting = [d for d in cands if est_fn(d) <= budget] or [cands[-1]]
    th = fitting[0]
    min_tiles = 4 if H >= 32 else (2 if H >= 16 else 1)
    for d in fitting:
        if d >= 8 and (H // d) >= min_tiles:
            th = d
            break
    return th


# ---------------------------------------------------------------------------
# Pallas kernels
# ---------------------------------------------------------------------------

def _im2col_matmul_relu_call(p, w, b, *, vmem_limit):
    """Row-tiled (patches @ W + bias) -> ReLU.  Used for conv1_1 (Cin=3) whose
    im2col is built lane-cheaply in the XLA wrapper.

    p: (N, H, W, K) bf16 patches, w: (K, Cout) bf16, b: (1, Cout) f32.
    returns (N, H, W, Cout) bf16.
    """
    N, H, W, K = p.shape
    _, Cout = w.shape

    def est(th):
        return (2 * th * W * K * 2 + 2 * th * W * Cout * 2
                + th * W * Cout * 4 + 2 * K * Cout * 2 + (2 << 20))

    TH = _pick_tile_h(H, est, False, vmem_limit // 2)
    n_rt = H // TH

    def kernel(p_ref, w_ref, b_ref, o_ref):
        acc = jnp.dot(p_ref[...].reshape(TH * W, K), w_ref[...],
                      preferred_element_type=jnp.float32)
        y = jnp.maximum(acc + b_ref[...], 0.0)
        o_ref[...] = y.reshape(TH, W, Cout).astype(o_ref.dtype)

    return pl.pallas_call(
        kernel,
        out_shape=jax.ShapeDtypeStruct((N, H, W, Cout), jnp.bfloat16),
        grid=(N, n_rt),
        in_specs=[
            pl.BlockSpec((None, TH, W, K), lambda n, r: (n, r, 0, 0)),
            pl.BlockSpec((K, Cout), lambda n, r: (0, 0)),
            pl.BlockSpec((1, Cout), lambda n, r: (0, 0)),
        ],
        out_specs=pl.BlockSpec((None, TH, W, Cout), lambda n, r: (n, r, 0, 0)),
        compiler_params=pltpu.CompilerParams(
            dimension_semantics=("parallel", "parallel"),
            vmem_limit_bytes=vmem_limit),
    )(p, w, b)


def _conv3x3_relu_call(x, w, b, *, fuse_pool, mxu_k, vmem_limit):
    """Row-tiled 3x3 conv (stride 1, zero pad 1) + bias + ReLU, optionally with
    a fused 2x2 maxpool.

    x: (N, H, W, Cin)  bf16 activations
    w: (9*Cin, Cout)   bf16, rows tap-major ((kh,kw) row-major, then cin)
    b: (1, Cout)       f32
    returns (N, Ho, Wo, Cout) bf16 (Ho,Wo = H//2,W//2 if fuse_pool else H,W)
    """
    x = x.astype(jnp.bfloat16)
    N, H, W, Cin = x.shape
    K9, Cout = w.shape
    assert K9 == 9 * Cin

    # Tap grouping: K = group*Cin matched to the MXU systolic depth.
    group = max(1, min(9, mxu_k // Cin))
    tap_groups = [list(range(g, min(g + group, 9))) for g in range(0, 9, group)]

    def est(th):
        tho = th // 2 if fuse_pool else th
        wo = W // 2 if fuse_pool else W
        return (2 * th * W * Cin * 2                       # input blocks (x2 bufs)
                + 2 * tho * wo * Cout * 2                   # output blocks
                + 2 * K9 * Cout * 2                         # weights (x2 bufs)
                + (th + 2) * (W + 2 * _ALIGN) * Cin * 2     # halo scratch
                + 2 * th * W * Cout * 4                     # f32 acc + relu temp
                + th * W * group * Cin * 2                  # im2col group slab
                + (2 << 20))

    TH = _pick_tile_h(H, est, fuse_pool, vmem_limit // 2)
    n_rt = H // TH
    THo, Wo = (TH // 2, W // 2) if fuse_pool else (TH, W)
    Hout = n_rt * THo
    W_scr = _ALIGN + W + _ALIGN
    L = _ALIGN

    def kernel(x_ref, xfull_ref, w_ref, b_ref, o_ref, xpad_ref, sem):
        zcol = jnp.zeros((TH + 2, 1, Cin), jnp.bfloat16)
        zrow = jnp.zeros((1, W, Cin), jnp.bfloat16)

        if n_rt > 1:
            n = pl.program_id(0)
            r = pl.program_id(1)
            row0 = r * TH
            top_row = jnp.maximum(row0 - 1, 0)
            bot_row = jnp.minimum(row0 + TH, H - 1)
            top_cp = pltpu.make_async_copy(
                xfull_ref.at[n, pl.ds(top_row, 1)],
                xpad_ref.at[pl.ds(0, 1), pl.ds(L, W)], sem.at[0])
            bot_cp = pltpu.make_async_copy(
                xfull_ref.at[n, pl.ds(bot_row, 1)],
                xpad_ref.at[pl.ds(TH + 1, 1), pl.ds(L, W)], sem.at[1])

            @pl.when(r > 0)
            def _():
                top_cp.start()

            @pl.when(r < n_rt - 1)
            def _():
                bot_cp.start()

        # Zero only the 1-px border strips (not the whole scratch).  Redone
        # every step so the kernel stays correct when the "parallel" grid is
        # sharded across TensorCores (each core has its own scratch).
        xpad_ref[:, L - 1:L, :] = zcol
        xpad_ref[:, L + W:L + W + 1, :] = zcol
        # Interior store at a sublane-aligned column offset (unmasked store),
        # overlapping with the in-flight halo-row DMAs (disjoint regions).
        xpad_ref[1:TH + 1, L:L + W, :] = x_ref[...]

        if n_rt > 1:
            @pl.when(r == 0)
            def _():
                xpad_ref[0:1, L:L + W, :] = zrow

            @pl.when(r == n_rt - 1)
            def _():
                xpad_ref[TH + 1:TH + 2, L:L + W, :] = zrow

            @pl.when(r > 0)
            def _():
                top_cp.wait()

            @pl.when(r < n_rt - 1)
            def _():
                bot_cp.wait()
        else:
            xpad_ref[0:1, L:L + W, :] = zrow
            xpad_ref[TH + 1:TH + 2, L:L + W, :] = zrow

        # Tap-grouped accumulating MXU matmuls (K = group*Cin ~= MXU depth).
        acc = jnp.zeros((TH * W, Cout), jnp.float32)
        for grp in tap_groups:
            slabs = [xpad_ref[dh:dh + TH, L - 1 + dw:L - 1 + dw + W, :]
                     for (dh, dw) in ((t // 3, t % 3) for t in grp)]
            patch = slabs[0] if len(slabs) == 1 else jnp.concatenate(slabs, axis=-1)
            patch = patch.reshape(TH * W, len(grp) * Cin)
            wrows = w_ref[grp[0] * Cin:(grp[-1] + 1) * Cin, :]
            acc = acc + jnp.dot(patch, wrows, preferred_element_type=jnp.float32)

        y = jnp.maximum(acc + b_ref[...], 0.0).reshape(TH, W, Cout)
        if fuse_pool:
            y = y[:2 * THo, :2 * Wo, :]
            yw = y.reshape(2 * THo, Wo, 2 * Cout)
            yw = jnp.maximum(yw[:, :, :Cout], yw[:, :, Cout:])   # pool W (lane halves)
            yh = yw.reshape(THo, 2, Wo, Cout)
            y = jnp.maximum(yh[:, 0], yh[:, 1])                  # pool H (row pairs)
        o_ref[...] = y.astype(o_ref.dtype)

    return pl.pallas_call(
        kernel,
        out_shape=jax.ShapeDtypeStruct((N, Hout, Wo, Cout), jnp.bfloat16),
        grid=(N, n_rt),
        in_specs=[
            pl.BlockSpec((None, TH, W, Cin), lambda n, r: (n, r, 0, 0)),
            pl.BlockSpec(memory_space=pl.ANY),   # full x: halo-row DMAs only
            pl.BlockSpec((K9, Cout), lambda n, r: (0, 0)),
            pl.BlockSpec((1, Cout), lambda n, r: (0, 0)),
        ],
        out_specs=pl.BlockSpec((None, THo, Wo, Cout), lambda n, r: (n, r, 0, 0)),
        scratch_shapes=[
            pltpu.VMEM((TH + 2, W_scr, Cin), jnp.bfloat16),
            pltpu.SemaphoreType.DMA((2,)),
        ],
        compiler_params=pltpu.CompilerParams(
            dimension_semantics=("parallel", "parallel"),
            vmem_limit_bytes=vmem_limit),
    )(x, x, w, b)


def _maxpool2x2_call(x, *, vmem_limit):
    """Standalone MaxPool2d(2,2); only used when the pre-pool relu is itself a
    requested feature (pool fusion disabled)."""
    N, H, W, C = x.shape
    Wo = W // 2

    def est(th):
        return 2 * th * W * C * 2 + 2 * (max(th // 2, 1)) * Wo * C * 2 + (1 << 20)

    TH = _pick_tile_h(H, est, True, vmem_limit // 2)
    n_rt = H // TH
    THo = TH // 2
    Hout = n_rt * THo

    def kernel(x_ref, o_ref):
        y = x_ref[:2 * THo, :2 * Wo, :]
        yw = y.reshape(2 * THo, Wo, 2 * C)
        yw = jnp.maximum(yw[:, :, :C], yw[:, :, C:])
        yh = yw.reshape(THo, 2, Wo, C)
        o_ref[...] = jnp.maximum(yh[:, 0], yh[:, 1]).astype(o_ref.dtype)

    return pl.pallas_call(
        kernel,
        out_shape=jax.ShapeDtypeStruct((N, Hout, Wo, C), x.dtype),
        grid=(N, n_rt),
        in_specs=[pl.BlockSpec((None, TH, W, C), lambda n, r: (n, r, 0, 0))],
        out_specs=pl.BlockSpec((None, THo, Wo, C), lambda n, r: (n, r, 0, 0)),
        compiler_params=pltpu.CompilerParams(
            dimension_semantics=("parallel", "parallel"),
            vmem_limit_bytes=vmem_limit),
    )(x)


# ---------------------------------------------------------------------------
# Module wrapper (glue in plain JAX)
# ---------------------------------------------------------------------------

class MultiVGGFeaturesExtractorPallas:
    # VGG19 layer names up to relu3_1 (index 11), matching the PyTorch `names` dict.
    _names = ['conv1_1', 'relu1_1', 'conv1_2', 'relu1_2', 'pool1',
              'conv2_1', 'relu2_1', 'conv2_2', 'relu2_2', 'pool2',
              'conv3_1', 'relu3_1']
    _conv_cfg = {  # name -> (Cin, Cout)
        'conv1_1': (3, 64), 'conv1_2': (64, 64),
        'conv2_1': (64, 128), 'conv2_2': (128, 128),
        'conv3_1': (128, 256),
    }

    def __init__(self, target_features=('relu1_1', 'relu2_1', 'relu3_1'),
                 use_bn=False, use_input_norm=True, requires_grad=False,
                 shave_edge=None, seed=0, output_nchw_f32=True):
        assert not use_bn, "TODO(synk): vgg19_bn variant not implemented"
        del requires_grad  # inference-only
        self.target_features = tuple(target_features)
        self.use_input_norm = use_input_norm
        self.shave_edge = shave_edge
        self.output_nchw_f32 = output_nchw_f32
        self.target_indexes = [self._names.index(k) for k in self.target_features]
        assert max(self.target_indexes) <= 11, "only layers up to relu3_1 are built here"
        assert all(k.startswith('relu') or k.startswith('pool')
                   for k in self.target_features), \
            "only post-activation / pool feature taps are supported"

        self.mean = jnp.array([0.485, 0.456, 0.406], jnp.float32)
        self.std = jnp.array([0.229, 0.224, 0.225], jnp.float32)

        self._vmem_limit = _vmem_limit_bytes()
        self._mxu_k = _mxu_k_depth()

        # Deterministic synthetic weights (He-scaled normals); not a checkpoint load.
        key = jax.random.PRNGKey(seed)
        self.params = {}
        for name, (cin, cout) in self._conv_cfg.items():
            key, kw, kb = jax.random.split(key, 3)
            scale = jnp.sqrt(2.0 / (9 * cin))
            w = jax.random.normal(kw, (9, cin, cout), jnp.float32) * scale
            b = jax.random.normal(kb, (1, cout), jnp.float32) * 0.01
            self.params[name] = (w.reshape(9 * cin, cout).astype(jnp.bfloat16),
                                 b.astype(jnp.float32))

    def __call__(self, x_nchw):
        # x_nchw: (N, 3, H, W) float32, like the PyTorch module.
        x = jnp.transpose(x_nchw, (0, 2, 3, 1)).astype(jnp.float32)  # -> NHWC

        if self.shave_edge:
            s = int(self.shave_edge)
            x = x[:, s:-s, s:-s, :]

        if self.use_input_norm:
            # Normalize the tiny 3-channel image in XLA, then zero-pad -> border
            # semantics exactly match the PyTorch reference (no weight folding).
            x = (x - self.mean) / self.std

        output = OrderedDict()

        def maybe_store(idx, act_nhwc):
            if idx in self.target_indexes:
                k = self.target_features[self.target_indexes.index(idx)]
                if self.output_nchw_f32:
                    output[k] = jnp.transpose(act_nhwc, (0, 3, 1, 2)).astype(jnp.float32)
                else:
                    output[k] = act_nhwc  # cheaper NHWC/bf16 tap (review item)

        i, n_names = 0, len(self._names)
        while i < n_names:
            name = self._names[i]
            if name.startswith('conv'):
                relu_idx = i + 1
                pool_idx = (i + 2 if (i + 2 < n_names and
                                      self._names[i + 2].startswith('pool')) else None)
                fuse = (pool_idx is not None) and (relu_idx not in self.target_indexes)
                w, b = self.params[name]
                if name == 'conv1_1':
                    # Lane-poor Cin=3 never enters the conv kernel: normalize,
                    # zero-pad and im2col in XLA, then a single dense matmul.
                    N, H, W, _ = x.shape
                    xp = jnp.pad(x.astype(jnp.bfloat16),
                                 ((0, 0), (1, 1), (1, 1), (0, 0)))
                    patches = jnp.concatenate(
                        [xp[:, dh:dh + H, dw:dw + W, :]
                         for dh in range(3) for dw in range(3)], axis=-1)
                    x = _im2col_matmul_relu_call(patches, w, b,
                                                 vmem_limit=self._vmem_limit)
                    maybe_store(relu_idx, x)
                    i = relu_idx + 1
                else:
                    x = _conv3x3_relu_call(x, w, b, fuse_pool=fuse,
                                           mxu_k=self._mxu_k,
                                           vmem_limit=self._vmem_limit)
                    if fuse:
                        maybe_store(pool_idx, x)
                        i = pool_idx + 1
                    else:
                        maybe_store(relu_idx, x)
                        i = relu_idx + 1
            elif name.startswith('pool'):
                x = _maxpool2x2_call(x, vmem_limit=self._vmem_limit)
                maybe_store(i, x)
                i += 1
            else:  # bare relu entries are fused into the conv kernels above
                i += 1

        return output


# ---------------------------------------------------------------------------
# Demo
# ---------------------------------------------------------------------------

if __name__ == "__main__":
    key = jax.random.PRNGKey(0)
    x = jax.random.uniform(key, (2, 3, 16, 16), jnp.float32)  # NCHW, image-like in [0,1]

    extractor = MultiVGGFeaturesExtractorPallas(
        target_features=('relu1_1', 'relu2_1', 'relu3_1'),
        use_input_norm=True, shave_edge=None, seed=0)

    feats = extractor(x)
    feats = jax.block_until_ready(feats)

    expected = {
        'relu1_1': (2, 64, 16, 16),
        'relu2_1': (2, 128, 8, 8),
        'relu3_1': (2, 256, 4, 4),
    }
    for k, shape in expected.items():
        assert feats[k].shape == shape, (k, feats[k].shape)
        assert feats[k].dtype == jnp.float32
        assert bool(jnp.all(feats[k] >= 0.0))      # post-ReLU (or max of post-ReLU)
        assert bool(jnp.all(jnp.isfinite(feats[k])))

    print("KERNEL_OK")
</pallas_src>

<mosaic_0001>
module attributes {stable_mosaic.version = 11 : i64} {
  func.func @kernel(%arg0: i32, %arg1: i32, %arg2: memref<1x8x16x27xbf16, #tpu.memory_space<vmem>>, %arg3: memref<27x64xbf16, #tpu.memory_space<vmem>>, %arg4: memref<1x64xf32, #tpu.memory_space<vmem>>, %arg5: memref<1x8x16x64xbf16, #tpu.memory_space<vmem>>) attributes {dimension_semantics = [#tpu.dimension_semantics<parallel>, #tpu.dimension_semantics<parallel>], iteration_bounds = array<i64: 2, 2>, scalar_prefetch = 0 : i64, scratch_operands = 0 : i64, tpu.core_type = #tpu.core_type<tc>, window_params = [{transform_indices = @transform_0, window_bounds = array<i64: 1, 8, 16, 27>}, {pipeline_mode = #tpu.pipeline_mode<synchronous>, transform_indices = @transform_1, window_bounds = array<i64: 27, 64>}, {pipeline_mode = #tpu.pipeline_mode<synchronous>, transform_indices = @transform_2, window_bounds = array<i64: 1, 64>}, {transform_indices = @transform_3, window_bounds = array<i64: 1, 8, 16, 64>}]} {
    %c0 = arith.constant 0 : index
    %c0_0 = arith.constant 0 : index
    %c0_1 = arith.constant 0 : index
    %c0_2 = arith.constant 0 : index
    %0 = vector.load %arg2[%c0, %c0_0, %c0_1, %c0_2] : memref<1x8x16x27xbf16, #tpu.memory_space<vmem>>, vector<1x8x16x27xbf16>
    %1 = vector.shape_cast %0 : vector<1x8x16x27xbf16> to vector<8x16x27xbf16>
    %2 = vector.shape_cast %1 : vector<8x16x27xbf16> to vector<128x27xbf16>
    %c0_3 = arith.constant 0 : index
    %c0_4 = arith.constant 0 : index
    %3 = vector.load %arg3[%c0_3, %c0_4] : memref<27x64xbf16, #tpu.memory_space<vmem>>, vector<27x64xbf16>
    %cst = arith.constant dense<0.000000e+00> : vector<128x64xf32>
    %4 = tpu.matmul %2, %3, %cst {dimension_numbers = #tpu.dot_dimension_numbers<[1], [0], [0], [1], [0, 0, 1, 1], [], []>} : vector<128x27xbf16>, vector<27x64xbf16>, vector<128x64xf32> -> vector<128x64xf32>
    %c0_5 = arith.constant 0 : index
    %c0_6 = arith.constant 0 : index
    %5 = vector.load %arg4[%c0_5, %c0_6] : memref<1x64xf32, #tpu.memory_space<vmem>>, vector<1x64xf32>
    %6 = vector.broadcast %5 : vector<1x64xf32> to vector<128x64xf32>
    %7 = arith.addf %4, %6 : vector<128x64xf32>
    %cst_7 = arith.constant 0.000000e+00 : f32
    %8 = vector.broadcast %cst_7 : f32 to vector<128x64xf32>
    %9 = arith.maximumf %7, %8 : vector<128x64xf32>
    %10 = vector.shape_cast %9 : vector<128x64xf32> to vector<8x16x64xf32>
    %11 = arith.truncf %10 : vector<8x16x64xf32> to vector<8x16x64xbf16>
    %c0_8 = arith.constant 0 : index
    %c0_9 = arith.constant 0 : index
    %c0_10 = arith.constant 0 : index
    %c0_11 = arith.constant 0 : index
    %12 = vector.load %arg5[%c0_8, %c0_9, %c0_10, %c0_11] : memref<1x8x16x64xbf16, #tpu.memory_space<vmem>>, vector<1x8x16x64xbf16>
    %13 = vector.shape_cast %12 : vector<1x8x16x64xbf16> to vector<8x16x64xbf16>
    %14 = vector.shape_cast %11 : vector<8x16x64xbf16> to vector<1x8x16x64xbf16>
    tpu.vector_store %arg5[%c0_8, %c0_9, %c0_10, %c0_11], %14 {strides = array<i32>} : memref<1x8x16x64xbf16, #tpu.memory_space<vmem>>, vector<1x8x16x64xbf16>,
    return
  }
  func.func @transform_0(%arg0: i32, %arg1: i32) -> (i32, i32, i32, i32) {
    %c0_i32 = arith.constant 0 : i32
    %c0_i32_0 = arith.constant 0 : i32
    %c0_i32_1 = arith.constant 0 : i32
    return %arg0, %arg1, %c0_i32, %c0_i32_0 : i32, i32, i32, i32
  }
  func.func @transform_1(%arg0: i32, %arg1: i32) -> (i32, i32) {
    %c0_i32 = arith.constant 0 : i32
    %c0_i32_0 = arith.constant 0 : i32
    %c0_i32_1 = arith.constant 0 : i32
    return %c0_i32, %c0_i32_0 : i32, i32
  }
  func.func @transform_2(%arg0: i32, %arg1: i32) -> (i32, i32) {
    %c0_i32 = arith.constant 0 : i32
    %c0_i32_0 = arith.constant 0 : i32
    %c0_i32_1 = arith.constant 0 : i32
    return %c0_i32, %c0_i32_0 : i32, i32
  }
  func.func @transform_3(%arg0: i32, %arg1: i32) -> (i32, i32, i32, i32) {
    %c0_i32 = arith.constant 0 : i32
    %c0_i32_0 = arith.constant 0 : i32
    %c0_i32_1 = arith.constant 0 : i32
    return %arg0, %arg1, %c0_i32, %c0_i32_0 : i32, i32, i32, i32
  }
}

</mosaic_0001>

<llo_original>
// kernel: tpu_custom_call.1
$region0: #{tpu_custom_call.1}
  #allocation0 [shape = 'u32[]', space=smem, size = 0x4, offset = 0x4, fixed_abs, tag = 'smem constant byte address 0x4 - core index']
  #allocation1 [shape = 'u32[72,128]{1,0:T(1,128)}', space=vmem, size = 0x9000, scoped, tag = 'internal scratch']
  %s0 = inlined_call_operand.hbm [shape: bf16[2,16,16,27], index: 0, kind: input, shape index: {}]
  %s1 = inlined_call_operand.hbm [shape: bf16[27,64], index: 1, kind: input, shape index: {}]
  %s2 = inlined_call_operand.vmem [shape: f32[1,64], index: 2, kind: input, shape index: {}]
  %s3 = inlined_call_operand.hbm [shape: bf16[2,16,16,64], index: 3, kind: output, shape index: {}]
  %s4 = sld [smem:[#allocation0]]
  $region53: #{tpu_custom_call.1} parent=0
    _
  %s6 = ssub.s32 1, %s4
  %s7 = scalar_select 0, %s6, %s4
  $region1: #{tpu_custom_call.1} parent=0
    #allocation2 [shape = 'u8[65536]{0}', space=vmem, size = 0x10000, scoped, tag = 'input window, operand 0']
    #allocation3 [shape = 's32[2]{0}', space=sflag, size = 0x8, scoped, tag = 'scoped memory for tpu_custom_call.1']
    #allocation4 [shape = 's32[2]{0}', space=sflag, size = 0x8, scoped, tag = 'scoped memory for tpu_custom_call.1']
    #allocation5 [shape = 'u8[8192]{0}', space=vmem, size = 0x2000, scoped, tag = 'input window, operand 1, single buffered']
    #allocation6 [shape = 's32[1]{0}', space=sflag, size = 0x4, scoped, tag = 'scoped memory for tpu_custom_call.1']
    #allocation7 [shape = 'u8[65536]{0}', space=vmem, size = 0x10000, scoped, tag = 'output window, operand 0']
    %8 = vsyncpa [#allocation3], 0
    %s9 = scalar_lea.sflag [#allocation3], 1
    %10 = vsyncpa %s9, 0
    %11 = vsyncpa [#allocation6], 0
    %12 = vsyncpa [#allocation4], 0
    %s13 = scalar_lea.sflag [#allocation4], 1
    %14 = vsyncpa %s13, 0
    loop: start=0, step=1, limit=6
    $region2: #{tpu_custom_call.1} parent=1 // loop_pre_header
      _
    $region3: #{tpu_custom_call.1} parent=1 // loop_header
      %s16 = sphi 0, %s20
      %p17 = scmp.ge.s32.totalorder %s16, 6
      %s23 = sphi 0, %s35
      %s24 = sphi 0, %s31
      %s25 = sphi 0, %s23
      %s26 = sphi 0, %s24
      %s27 = sphi 0, %s25
      %s28 = sphi 0, %s26
      %s40 = sphi 0, %s42
      %s43 = sphi 0, %s40
      %s44 = sphi 0, %s43
      %s60 = sphi 0, %s44
      %s64 = sphi 0, %s64
      %s66 = sphi 0, %s64
      %s67 = sphi 0, %s66
      %s81 = sphi 0, %s67
      %s85 = sphi 0, %s85
      %s87 = sphi 0, %s85
      %s88 = sphi 0, %s87
      %s102 = sphi 0, %s88
      %s110 = sphi 0, %s112
      %s113 = sphi 0, %s110
      %s114 = sphi 0, %s113
      %s130 = sphi 0, %s114
    $region4: #{tpu_custom_call.1} parent=1 // loop_header_branch
      %19 = sbr.rel (%p17) target = $region8
    $region5: #{tpu_custom_call.1} parent=1 // loop_body
      %s21 = ssub.s32 %s16, 1
      %s22 = ssub.s32 %s16, 2
      %s29 = sadd.s32 1, %s24
      %p30 = scmp.ge.s32.totalorder %s29, 2
      %s31 = scalar_select %p30, 0, %s29
      %s32 = sadd.s32 1, %s23
      %s33 = scalar_select %p30, %s32, %s23
      %p34 = scmp.ge.s32.totalorder %s33, 2
      %s35 = scalar_select %p34, 0, %s33
      %s36 = ssub.s32 %s23, %s35
      %s37 = ssub.s32 %s24, %s31
      %s38 = sor.u32 %s36, %s37
      %p39 = scmp.eq.s32.totalorder %s38, 0
      %s41 = sadd.s32 %s40, 1
      %s42 = scalar_select %p39, %s40, %s41
      %p45 = pneg %p39
      %p46 = scmp.eq.s32.totalorder %s16, 3
      %p47 = por %p45, %p46
      %p48 = scmp.ne.s32.totalorder %s40, %s43
      %p49 = scmp.eq.s32.totalorder %s16, 0
      %p50 = por %p48, %p49
      %p51 = scmp.ne.s32.totalorder %s40, %s43
      %p52 = scmp.eq.s32.totalorder %s21, 3
      %p53 = por %p51, %p52
      %p54 = scmp.ne.s32.totalorder %s43, %s44
      %p55 = scmp.eq.s32.totalorder %s21, 0
      %p56 = por %p54, %p55
      %p57 = scmp.ne.s32.totalorder %s43, %s44
      %p58 = scmp.eq.s32.totalorder %s22, 3
      %p59 = por %p57, %p58
      %p61 = scmp.ne.s32.totalorder %s44, %s60
      %p62 = scmp.eq.s32.totalorder %s22, 0
      %p63 = por %p61, %p62
      %s65 = sadd.s32 %s64, 1
      %p68 = scmp.eq.s32.totalorder %s16, 3
      %p69 = scmp.ne.s32.totalorder %s64, %s66
      %p70 = scmp.eq.s32.totalorder %s16, 0
      %p71 = por %p69, %p70
      %p72 = scmp.ne.s32.totalorder %s64, %s66
      %p73 = scmp.eq.s32.totalorder %s21, 3
      %p74 = por %p72, %p73
      %p75 = scmp.ne.s32.totalorder %s66, %s67
      %p76 = scmp.eq.s32.totalorder %s21, 0
      %p77 = por %p75, %p76
      %p78 = scmp.ne.s32.totalorder %s66, %s67
      %p79 = scmp.eq.s32.totalorder %s22, 3
      %p80 = por %p78, %p79
      %p82 = scmp.ne.s32.totalorder %s67, %s81
      %p83 = scmp.eq.s32.totalorder %s22, 0
      %p84 = por %p82, %p83
      %s86 = sadd.s32 %s85, 1
      %p89 = scmp.eq.s32.totalorder %s16, 3
      %p90 = scmp.ne.s32.totalorder %s85, %s87
      %p91 = scmp.eq.s32.totalorder %s16, 0
      %p92 = por %p90, %p91
      %p93 = scmp.ne.s32.totalorder %s85, %s87
      %p94 = scmp.eq.s32.totalorder %s21, 3
      %p95 = por %p93, %p94
      %p96 = scmp.ne.s32.totalorder %s87, %s88
      %p97 = scmp.eq.s32.totalorder %s21, 0
      %p98 = por %p96, %p97
      %p99 = scmp.ne.s32.totalorder %s87, %s88
      %p100 = scmp.eq.s32.totalorder %s22, 3
      %p101 = por %p99, %p100
      %p103 = scmp.ne.s32.totalorder %s88, %s102
      %p104 = scmp.eq.s32.totalorder %s22, 0
      %p105 = por %p103, %p104
      %s106 = ssub.s32 %s23, %s35
      %s107 = ssub.s32 %s24, %s31
      %s108 = sor.u32 %s106, %s107
      %p109 = scmp.eq.s32.totalorder %s108, 0
      %s111 = sadd.s32 %s110, 1
      %s112 = scalar_select %p109, %s110, %s111
      %p115 = pneg %p109
      %p116 = scmp.eq.s32.totalorder %s16, 3
      %p117 = por %p115, %p116
      %p118 = scmp.ne.s32.totalorder %s110, %s113
      %p119 = scmp.eq.s32.totalorder %s16, 0
      %p120 = por %p118, %p119
      %p121 = scmp.ne.s32.totalorder %s110, %s113
      %p122 = scmp.eq.s32.totalorder %s21, 3
      %p123 = por %p121, %p122
      %p124 = scmp.ne.s32.totalorder %s113, %s114
      %p125 = scmp.eq.s32.totalorder %s21, 0
      %p126 = por %p124, %p125
      %p127 = scmp.ne.s32.totalorder %s113, %s114
      %p128 = scmp.eq.s32.totalorder %s22, 3
      %p129 = por %p127, %p128
      %p131 = scmp.ne.s32.totalorder %s114, %s130
      %p132 = scmp.eq.s32.totalorder %s22, 0
      %p133 = por %p131, %p132
      %p134 = scmp.le.s32.totalorder 1, %s16
      %p135 = scmp.lt.s32.totalorder %s16, 5
      %p136 = pnand %p134, %p135
      %p137 = pneg %p136
      // Predicated region
      $region9: #{tpu_custom_call.1} parent=5 // pred_check
        _
      $region10: #{tpu_custom_call.1} parent=5 // pred_check_branch
        %139 = sbr.rel (%p136) target = $region12
      $region11: #{tpu_custom_call.1} parent=5 // pred_region
        %s140 = ssub.s32 %s16, 1
        // Predicated region
        $region13: #{tpu_custom_call.1} parent=11 // pred_check
          %p141 = pneg %p77
        $region14: #{tpu_custom_call.1} parent=11 // pred_check_branch
          %143 = sbr.rel (%p141) target = $region16
        $region15: #{tpu_custom_call.1} parent=11 // pred_region
          %145 = vsyncadd [#allocation6], 0
          %s146 = sshll.u32 %s1, 4
          %s147 = int_to_ptr.hbm [resolvable:$true] %s146
          %s148 = sshll.u32 [#allocation5], 4
          %s149 = int_to_ptr.vmem [resolvable:$true] %s148
          %154 = dma.hbm_to_vmem [thread:$0]  %s147, 256, %s149, [#allocation6], 64, 64, 4
        $region16: #{tpu_custom_call.1} parent=11 // pred_fallthru
          _
        // Predicated region
        $region17: #{tpu_custom_call.1} parent=11 // pred_check
          %p155 = pneg %p98
        $region18: #{tpu_custom_call.1} parent=11 // pred_check_branch
          %157 = sbr.rel (%p155) target = $region20
        $region19: #{tpu_custom_call.1} parent=11 // pred_region
          _
        $region20: #{tpu_custom_call.1} parent=11 // pred_fallthru
          _
      $region12: #{tpu_custom_call.1} parent=5 // pred_fallthru
        _
      %p158 = scmp.lt.s32.totalorder %s16, 4
      // Predicated region
      $region21: #{tpu_custom_call.1} parent=5 // pred_check
        %p159 = pneg %p158
      $region22: #{tpu_custom_call.1} parent=5 // pred_check_branch
        %161 = sbr.rel (%p159) target = $region24
      $region23: #{tpu_custom_call.1} parent=5 // pred_region
        // Predicated region
        $region25: #{tpu_custom_call.1} parent=23 // pred_check
          %p162 = pneg %p50
        $region26: #{tpu_custom_call.1} parent=23 // pred_check_branch
          %164 = sbr.rel (%p162) target = $region28
        $region27: #{tpu_custom_call.1} parent=23 // pred_region
          %s165 = sand.u32 %s40, 1
          %s166 = scalar_lea.sflag [#allocation3], %s165
          %s167 = sand.u32 %s40, 1
          %s168 = smul.addr %s167, 64
          %s169 = scalar_lea.vmem [#allocation2], %s168
          %s170 = smul.u32 8, %s24
          %172 = vsyncadd %s166, 0
          %s173 = smul.addr %s170, 2
          %s174 = smul.addr %s23, 32
          %s175 = sadd.s32 %s173, %s174
          %s176 = smul.addr %s175, 4
          %s177 = scalar_lea.hbm %s0, %s176
          %s178 = sshll.u32 %s177, 4
          %s179 = int_to_ptr.hbm [resolvable:$true] %s178
          %s180 = sshll.u32 %s169, 4
          %s181 = int_to_ptr.vmem [resolvable:$true] %s180
          %186 = dma.hbm_to_vmem [thread:$0]  %s179, 1024, %s181, %s166, 64, 64, 4
        $region28: #{tpu_custom_call.1} parent=23 // pred_fallthru
          _
      $region24: #{tpu_custom_call.1} parent=5 // pred_fallthru
        _
      %p187 = scmp.le.s32.totalorder 1, %s16
      %p188 = scmp.lt.s32.totalorder %s16, 5
      %p189 = pnand %p187, %p188
      %p190 = pneg %p189
      // Predicated region
      $region29: #{tpu_custom_call.1} parent=5 // pred_check
        _
      $region30: #{tpu_custom_call.1} parent=5 // pred_check_branch
        %192 = sbr.rel (%p189) target = $region32
      $region31: #{tpu_custom_call.1} parent=5 // pred_region
        %s193 = ssub.s32 %s16, 1
        %s194 = sand.u32 %s43, 1
        %s195 = scalar_lea.sflag [#allocation3], %s194
        %s196 = sand.u32 %s43, 1
        %s197 = smul.addr %s196, 64
        %s198 = scalar_lea.vmem [#allocation2], %s197
        // Predicated region
        $region33: #{tpu_custom_call.1} parent=31 // pred_check
          %p199 = pneg %p56
        $region34: #{tpu_custom_call.1} parent=31 // pred_check_branch
          %201 = sbr.rel (%p199) target = $region36
        $region35: #{tpu_custom_call.1} parent=31 // pred_region
          %203 = dma.done %s195, 1024
        $region36: #{tpu_custom_call.1} parent=31 // pred_fallthru
          _
        // Predicated region
        $region37: #{tpu_custom_call.1} parent=31 // pred_check
          %p204 = pneg %p77
        $region38: #{tpu_custom_call.1} parent=31 // pred_check_branch
          %206 = sbr.rel (%p204) target = $region40
        $region39: #{tpu_custom_call.1} parent=31 // pred_region
          %208 = dma.done [#allocation6], 256
        $region40: #{tpu_custom_call.1} parent=31 // pred_fallthru
          _
        %s209 = sand.u32 %s43, 1
        %s210 = scalar_lea.sflag [#allocation3], %s209
        %s211 = sand.u32 %s43, 1
        %s212 = smul.addr %s211, 64
        %s213 = scalar_lea.vmem [#allocation2], %s212
        %p214 = pneg %p56
        %p215 = pneg %p53
        %p216 = pneg %p77
        %p217 = pneg %p74
        %p218 = pneg %p98
        %p219 = pneg %p95
        %p220 = pneg %p126
        %p221 = pneg %p123
        %s222 = sand.u32 %s113, 1
        %s223 = scalar_lea.sflag [#allocation4], %s222
        %s224 = sand.u32 %s113, 1
        %s225 = smul.addr %s224, 64
        %s226 = scalar_lea.vmem [#allocation7], %s225
        %s227 = smul.u32 8, %s26
        %s228 = smul.u32 8, %s26
        %v230 = vld [vmem:[%s198] sm:$0xf]
        %v231 = vld [vmem:[%s198 + $0x4] sm:$0xf]
        %v232 = vld [vmem:[%s198 + $0x8] sm:$0xf]
        %v233 = vld [vmem:[%s198 + $0xc] sm:$0xf]
        %v234 = vld [vmem:[%s198 + $0x10] sm:$0xf]
        %v235 = vld [vmem:[%s198 + $0x14] sm:$0xf]
        %v236 = vld [vmem:[%s198 + $0x18] sm:$0xf]
        %v237 = vld [vmem:[%s198 + $0x1c] sm:$0xf]
        %v238 = vld [vmem:[%s198 + $0x20] sm:$0xf]
        %v239 = vld [vmem:[%s198 + $0x24] sm:$0xf]
        %v240 = vld [vmem:[%s198 + $0x28] sm:$0xf]
        %v241 = vld [vmem:[%s198 + $0x2c] sm:$0xf]
        %v242 = vld [vmem:[%s198 + $0x30] sm:$0xf]
        %v243 = vld [vmem:[%s198 + $0x34] sm:$0xf]
        %v244 = vld [vmem:[%s198 + $0x38] sm:$0xf]
        %v245 = vld [vmem:[%s198 + $0x3c] sm:$0xf]
        %v246 = vld [vmem:[#allocation5] sm:$0xf]
        %v247 = vld [vmem:[#allocation5 + $0x4] sm:$0xf]
        %v248 = vld [vmem:[#allocation5 + $0x8] sm:$0xf]
        %v249 = vld [vmem:[#allocation5 + $0xc] sm:$0x3]
        %v250 = vld [vmem:[%s2] sm:$0x1]
        %v252 = vperm.slane %v250, 0
        %v270 = vunpack.c.l.b16 %v230
        %v271 = vunpack.c.l.b16 %v231
        %v272 = vunpack.c.l.b16 %v232
        %v273 = vunpack.c.l.b16 %v233
        %v274 = vunpack.c.l.b16 %v234
        %v275 = vunpack.c.l.b16 %v235
        %v276 = vunpack.c.l.b16 %v236
        %v277 = vunpack.c.l.b16 %v237
        %v278 = vunpack.c.l.b16 %v238
        %v279 = vunpack.c.l.b16 %v239
        %v280 = vunpack.c.l.b16 %v240
        %v281 = vunpack.c.l.b16 %v241
        %v282 = vunpack.c.l.b16 %v242
        %v283 = vunpack.c.l.b16 %v243
        %v284 = vunpack.c.l.b16 %v244
        %v285 = vunpack.c.l.b16 %v245
        %v286 = vpack.c.b16 %v271, %v270
        %v287 = vpack.c.b16 %v273, %v272
        %v288 = vpack.c.b16 %v275, %v274
        %v289 = vpack.c.b16 %v277, %v276
        %v290 = vpack.c.b16 %v279, %v278
        %v291 = vpack.c.b16 %v281, %v280
        %v292 = vpack.c.b16 %v283, %v282
        %v293 = vpack.c.b16 %v285, %v284
        %v298 = vunpack.c.l.b16 %v246
        %v299 = vunpack.c.l.b16 %v247
        %v300 = vunpack.c.l.b16 %v248
        %v301 = vunpack.c.l.b16 %v249
        %v302 = vpack.c.b16 %v299, %v298
        %v303 = vpack.c.b16 %v301, %v300
        %vm305 = vcmask 220160
        %v307 = vsel %vm305, %v286, 0
        %v310 = vsel %vm305, %v287, 0
        %v313 = vsel %vm305, %v288, 0
        %v316 = vsel %vm305, %v289, 0
        %v319 = vsel %vm305, %v290, 0
        %v322 = vsel %vm305, %v291, 0
        %v325 = vsel %vm305, %v292, 0
        %v328 = vsel %vm305, %v293, 0
        %vm330 = vcmask 1044480
        %vm331 = vcmask 1045504
        %v332 = vsel %vm330, 4294967295, 65535
        %v333 = vsel %vm331, %v332, 0
        %v335 = vand.u32 %v303, %v333
        %337 = vmatpush.bf16.msra.mxu0 0
        %338 = vmatpush.bf16.msra.mxu0 0
        %339 = vmatpush.bf16.msra.mxu0 0
        %340 = vmatpush.bf16.msra.mxu0 0
        %341 = vmatpush.bf16.msra.mxu0 0
        %342 = vmatpush.bf16.msra.mxu0 0
        %343 = vmatpush.bf16.msra.mxu0 %v335
        %344 = vmatpush.bf16.msra.mxu0 %v302
        %345 = vmatmul.bf16.gmra.mxu0 %v307
        %v346 = vpop.f32.mrf.mxu0
        %v347 = vadd.f32 %v252, %v346
        %v348 = vpop.f32.mrf.mxu0
        %v349 = vadd.f32 %v252, %v348
        %350 = vmatmul.bf16.gmra.mxu0 %v310
        %v351 = vpop.f32.mrf.mxu0
        %v352 = vadd.f32 %v252, %v351
        %v353 = vpop.f32.mrf.mxu0
        %v354 = vadd.f32 %v252, %v353
        %355 = vmatmul.bf16.gmra.mxu0 %v313
        %v356 = vpop.f32.mrf.mxu0
        %v357 = vadd.f32 %v252, %v356
        %v358 = vpop.f32.mrf.mxu0
        %v359 = vadd.f32 %v252, %v358
        %360 = vmatmul.bf16.gmra.mxu0 %v316
        %v361 = vpop.f32.mrf.mxu0
        %v362 = vadd.f32 %v252, %v361
        %v363 = vpop.f32.mrf.mxu0
        %v364 = vadd.f32 %v252, %v363
        %365 = vmatmul.bf16.gmra.mxu0 %v319
        %v366 = vpop.f32.mrf.mxu0
        %v367 = vadd.f32 %v252, %v366
        %v368 = vpop.f32.mrf.mxu0
        %v369 = vadd.f32 %v252, %v368
        %370 = vmatmul.bf16.gmra.mxu0 %v322
        %v371 = vpop.f32.mrf.mxu0
        %v372 = vadd.f32 %v252, %v371
        %v373 = vpop.f32.mrf.mxu0
        %v374 = vadd.f32 %v252, %v373
        %375 = vmatmul.bf16.gmra.mxu0 %v325
        %v376 = vpop.f32.mrf.mxu0
        %v377 = vadd.f32 %v252, %v376
        %v378 = vpop.f32.mrf.mxu0
        %v379 = vadd.f32 %v252, %v378
        %380 = vmatmul.bf16.gmra.mxu0 %v328
        %v381 = vpop.f32.mrf.mxu0
        %v382 = vadd.f32 %v252, %v381
        %v383 = vpop.f32.mrf.mxu0
        %v384 = vadd.f32 %v252, %v383
        %385 = vdwg.mxu0
        %v386 = vmax.f32 %v347, 0.0
        %v387 = vmax.f32 %v349, 0.0
        %v388 = vmax.f32 %v352, 0.0
        %v389 = vmax.f32 %v354, 0.0
        %v390 = vmax.f32 %v357, 0.0
        %v391 = vmax.f32 %v359, 0.0
        %v392 = vmax.f32 %v362, 0.0
        %v393 = vmax.f32 %v364, 0.0
        %v394 = vmax.f32 %v367, 0.0
        %v395 = vmax.f32 %v369, 0.0
        %v396 = vmax.f32 %v372, 0.0
        %v397 = vmax.f32 %v374, 0.0
        %v398 = vmax.f32 %v377, 0.0
        %v399 = vmax.f32 %v379, 0.0
        %v400 = vmax.f32 %v382, 0.0
        %v401 = vmax.f32 %v384, 0.0
        %v402 = vpack.c.bf16 %v386, %v386
        %v403 = vpack.c.bf16 %v387, %v387
        %v404 = vpack.c.bf16 %v388, %v388
        %v405 = vpack.c.bf16 %v389, %v389
        %v406 = vpack.c.bf16 %v390, %v390
        %v407 = vpack.c.bf16 %v391, %v391
        %v408 = vpack.c.bf16 %v392, %v392
        %v409 = vpack.c.bf16 %v393, %v393
        %v410 = vpack.c.bf16 %v394, %v394
        %v411 = vpack.c.bf16 %v395, %v395
        %v412 = vpack.c.bf16 %v396, %v396
        %v413 = vpack.c.bf16 %v397, %v397
        %v414 = vpack.c.bf16 %v398, %v398
        %v415 = vpack.c.bf16 %v399, %v399
        %v416 = vpack.c.bf16 %v400, %v400
        %v417 = vpack.c.bf16 %v401, %v401
        %vm418 = vcmask 519168
        %419 = vst.msk [vmem:[%s226] sm:$0xf] %vm418, %v402
        %420 = vst.msk [vmem:[%s226 + $0x4] sm:$0xf] %vm418, %v403
        %421 = vst.msk [vmem:[%s226 + $0x8] sm:$0xf] %vm418, %v404
        %422 = vst.msk [vmem:[%s226 + $0xc] sm:$0xf] %vm418, %v405
        %423 = vst.msk [vmem:[%s226 + $0x10] sm:$0xf] %vm418, %v406
        %424 = vst.msk [vmem:[%s226 + $0x14] sm:$0xf] %vm418, %v407
        %425 = vst.msk [vmem:[%s226 + $0x18] sm:$0xf] %vm418, %v408
        %426 = vst.msk [vmem:[%s226 + $0x1c] sm:$0xf] %vm418, %v409
        %427 = vst.msk [vmem:[%s226 + $0x20] sm:$0xf] %vm418, %v410
        %428 = vst.msk [vmem:[%s226 + $0x24] sm:$0xf] %vm418, %v411
        %429 = vst.msk [vmem:[%s226 + $0x28] sm:$0xf] %vm418, %v412
        %430 = vst.msk [vmem:[%s226 + $0x2c] sm:$0xf] %vm418, %v413
        %431 = vst.msk [vmem:[%s226 + $0x30] sm:$0xf] %vm418, %v414
        %432 = vst.msk [vmem:[%s226 + $0x34] sm:$0xf] %vm418, %v415
        %433 = vst.msk [vmem:[%s226 + $0x38] sm:$0xf] %vm418, %v416
        %434 = vst.msk [vmem:[%s226 + $0x3c] sm:$0xf] %vm418, %v417
        %s435 = sand.u32 %s113, 1
        %s436 = scalar_lea.sflag [#allocation4], %s435
        %s437 = sand.u32 %s113, 1
        %s438 = smul.addr %s437, 64
        %s439 = scalar_lea.vmem [#allocation7], %s438
        // Predicated region
        $region41: #{tpu_custom_call.1} parent=31 // pred_check
          %p440 = pneg %p123
        $region42: #{tpu_custom_call.1} parent=31 // pred_check_branch
          %442 = sbr.rel (%p440) target = $region44
        $region43: #{tpu_custom_call.1} parent=31 // pred_region
          %s443 = smul.u32 8, %s26
          %445 = vsyncadd %s436, 0
          %s446 = smul.addr %s443, 2
          %s447 = smul.addr %s25, 32
          %s448 = sadd.s32 %s446, %s447
          %s449 = smul.addr %s448, 4
          %s450 = scalar_lea.hbm %s3, %s449
          %s451 = sshll.u32 %s439, 4
          %s452 = int_to_ptr.vmem [resolvable:$true] %s451
          %s453 = sshll.u32 %s450, 4
          %s454 = int_to_ptr.hbm [resolvable:$true] %s453
          %459 = dma.vmem_to_hbm [thread:$0]  %s452, 1024, %s454, %s436, 64, 64, 4
        $region44: #{tpu_custom_call.1} parent=31 // pred_fallthru
          _
      $region32: #{tpu_custom_call.1} parent=5 // pred_fallthru
        _
      %p460 = scmp.le.s32.totalorder 2, %s16
      // Predicated region
      $region45: #{tpu_custom_call.1} parent=5 // pred_check
        %p461 = pneg %p460
      $region46: #{tpu_custom_call.1} parent=5 // pred_check_branch
        %463 = sbr.rel (%p461) target = $region48
      $region47: #{tpu_custom_call.1} parent=5 // pred_region
        %s464 = ssub.s32 %s16, 2
        // Predicated region
        $region49: #{tpu_custom_call.1} parent=47 // pred_check
          %p465 = pneg %p129
        $region50: #{tpu_custom_call.1} parent=47 // pred_check_branch
          %467 = sbr.rel (%p465) target = $region52
        $region51: #{tpu_custom_call.1} parent=47 // pred_region
          %s468 = sand.u32 %s114, 1
          %s469 = scalar_lea.sflag [#allocation4], %s468
          %s470 = sand.u32 %s114, 1
          %s471 = smul.addr %s470, 64
          %s472 = scalar_lea.vmem [#allocation7], %s471
          %474 = dma.done %s469, 1024
        $region52: #{tpu_custom_call.1} parent=47 // pred_fallthru
          _
      $region48: #{tpu_custom_call.1} parent=5 // pred_fallthru
        _
    $region6: #{tpu_custom_call.1} parent=1 // loop_footer
      %s20 = sadd.s32 1, %s16
    $region7: #{tpu_custom_call.1} parent=1 // loop_footer_branch
      %15 = sbr.rel target = $region3
    $region8: #{tpu_custom_call.1} parent=1 // loop_exit
      _
    %475 = vsyncpa [#allocation3], 1
    %s476 = scalar_lea.sflag [#allocation3], 1
    %477 = vsyncpa %s476, 1
    %478 = vsyncpa [#allocation6], 1
    %479 = vsyncpa [#allocation4], 1
    %s480 = scalar_lea.sflag [#allocation4], 1
    %481 = vsyncpa %s480, 1

</llo_original>
